<compile_context>
chip_gen: v7x
topology: tpu7x:2x2x1
jax: 0.10.0
libtpu: 0.0.40
codegen_flags: <defaults>
</compile_context>

<pallas_src>
import functools

import jax
import jax.numpy as jnp
from jax.experimental import pallas as pl
from jax.experimental.pallas import tpu as pltpu

D = 768  # embedding dim is hard-coded to 768 in the PyTorch module


# -----------------------------------------------------------------------------
# Fused Pallas kernel:
#   for each (spatial-tile s, batch b):   acc[s_tile, D] = sum_t patches[b,t,s,:] @ W
#   on last t:                            out[b, s, :] = acc / T + cls_pattern[s, :]
# where cls_pattern[s, d] = cls[(s*D + d) // HW] reproduces torch's raw
# `out.reshape(-1, T, 768, H, W) + cls.reshape(-1,1,768,1,1)` semantics exactly
# (mean-then-add == add-then-mean because cls is constant over T).
# -----------------------------------------------------------------------------
def _fused_patch_mean_cls_kernel(p_ref, w_ref, c_ref, o_ref, acc_ref, *, inv_t):
    t = pl.program_id(2)

    @pl.when(t == 0)
    def _init():
        acc_ref[...] = jnp.zeros_like(acc_ref)

    # (s_tile, K) @ (K, D) on the MXU with f32 accumulation.
    # Note: K=96 pads the MXU K lanes to 128 (minor, matmul is tiny vs. bytes moved).
    acc_ref[...] += jnp.dot(p_ref[0, 0], w_ref[...],
                            preferred_element_type=jnp.float32)

    @pl.when(t == pl.num_programs(2) - 1)
    def _finalize():
        # Lane-dense (s_tile, 768) store.
        o_ref[0] = (acc_ref[...] * inv_t + c_ref[...]).astype(o_ref.dtype)


def _pick_s_tile(hw, max_tile=256):
    """Spatial-token tile: divides HW, multiple of 8 (sublane aligned) when tiled."""
    if hw <= max_tile:
        return hw
    for cand in (256, 128, 64, 32, 16, 8):
        if cand <= max_tile and hw % cand == 0:
            return cand
    return hw


# -----------------------------------------------------------------------------
# feature_mvit.forward equivalent (stand-in extractor fused with the head).
# -----------------------------------------------------------------------------
def feature_mvit_forward(x, params, patch=(2, 4, 4), s_tile=None):
    B, C, Tin, Hin, Win = x.shape
    pt, ph, pw = patch
    T, H, W = Tin // pt, Hin // ph, Win // pw
    HW = H * W
    K = C * pt * ph * pw

    # Patchify (pure layout work; XLA fuses the bf16 cast into the transpose).
    xr = x.reshape(B, C, T, pt, H, ph, W, pw)
    xr = jnp.transpose(xr, (0, 2, 4, 6, 1, 3, 5, 7))          # (B,T,H,W,C,pt,ph,pw)
    patches = xr.reshape(B, T, HW, K).astype(jnp.bfloat16)    # (B, T, HW, K)
    w = params["w_embed"].astype(jnp.bfloat16)                # (K, D)

    # cls pattern in the raw-reshaped (token, channel) coordinates:
    #   cls_pattern[s, d] = cls[(s*D + d) // HW]
    cls2 = jnp.repeat(params["cls"].astype(jnp.float32), HW).reshape(HW, D)

    if s_tile is None:
        s_tile = _pick_s_tile(HW)
    assert HW % s_tile == 0 and (s_tile == HW or s_tile % 8 == 0)

    # T last => reduction axis; cls/W blocks are resident across the inner axes.
    grid = (HW // s_tile, B, T)

    out = pl.pallas_call(
        functools.partial(_fused_patch_mean_cls_kernel, inv_t=1.0 / T),
        out_shape=jax.ShapeDtypeStruct((B, HW, D), jnp.float32),
        grid_spec=pltpu.PrefetchScalarGridSpec(
            num_scalar_prefetch=0,
            grid=grid,
            in_specs=[
                # patches: one (s_tile, K) slab per (b, t, s-tile)
                pl.BlockSpec((1, 1, s_tile, K), lambda s, b, t: (b, t, s, 0)),
                # weights: full (K, D), constant index -> stays resident in VMEM
                pl.BlockSpec((K, D), lambda s, b, t: (0, 0)),
                # cls pattern: per s-tile, constant across (b, t) -> resident
                pl.BlockSpec((s_tile, D), lambda s, b, t: (s, 0)),
            ],
            out_specs=pl.BlockSpec((1, s_tile, D), lambda s, b, t: (b, s, 0)),
            scratch_shapes=[pltpu.VMEM((s_tile, D), jnp.float32)],
        ),
        compiler_params=pltpu.CompilerParams(
            dimension_semantics=("parallel", "parallel", "arbitrary"),
            vmem_limit_bytes=32 * 1024 * 1024,
        ),
    )(patches, w, cls2)

    # (B, HW, D) raw row-major reshape == torch's (B, 768, H, W) output layout.
    return out.reshape(B, D, H, W)


# -----------------------------------------------------------------------------
# Pure-JAX f32 reference mirroring the PyTorch forward (for verification)
# -----------------------------------------------------------------------------
def reference_forward(x, params, patch=(2, 4, 4)):
    B, C, Tin, Hin, Win = x.shape
    pt, ph, pw = patch
    T, H, W = Tin // pt, Hin // ph, Win // pw
    xr = x.reshape(B, C, T, pt, H, ph, W, pw)
    xr = jnp.transpose(xr, (0, 2, 4, 6, 1, 3, 5, 7))
    patches = xr.reshape(B * T * H * W, C * pt * ph * pw)
    emb = (patches @ params["w_embed"]).reshape(B, T * H * W, D)
    cls_tok = jnp.broadcast_to(params["cls"][None, None, :], (B, 1, D))
    tokens = jnp.concatenate([cls_tok, emb], axis=1)
    # exact torch forward semantics
    out = tokens[:, 1:, :]
    cls_token = tokens[:, 0, :]
    cls_token = cls_token.reshape(-1, 1, D, 1, 1)
    out = out.reshape(-1, T, D, H, W)
    out = out + cls_token
    out = jnp.mean(out, axis=1)
    return out


if __name__ == "__main__":
    key = jax.random.PRNGKey(0)
    k_x, k_w, k_c = jax.random.split(key, 3)

    # small deterministic shapes: B=2, C=3, T_in=4, H_in=16, W_in=16
    B, C, Tin, Hin, Win = 2, 3, 4, 16, 16
    pt, ph, pw = 2, 4, 4
    K = C * pt * ph * pw  # 96

    x = jax.random.normal(k_x, (B, C, Tin, Hin, Win), dtype=jnp.float32)
    params = {
        "w_embed": jax.random.normal(k_w, (K, D), dtype=jnp.float32) * 0.02,
        "cls": jax.random.normal(k_c, (D,), dtype=jnp.float32) * 0.02,
    }

    out = jax.block_until_ready(feature_mvit_forward(x, params))
    ref = jax.block_until_ready(reference_forward(x, params))

    assert out.shape == (B, D, Hin // ph, Win // pw), out.shape
    # bf16 MXU operands (per perf guidance) -> tolerance loosened vs f32 reference.
    max_err = float(jnp.max(jnp.abs(out - ref)))
    assert jnp.allclose(out, ref, rtol=2e-2, atol=2e-2), max_err
    print("KERNEL_OK")
</pallas_src>

<mosaic_0001>
module attributes {stable_mosaic.version = 11 : i64} {
  func.func @_fused_patch_mean_cls_kernel(%arg0: i32, %arg1: i32, %arg2: i32, %arg3: memref<1x1x16x96xbf16, #tpu.memory_space<vmem>>, %arg4: memref<96x768xbf16, #tpu.memory_space<vmem>>, %arg5: memref<16x768xf32, #tpu.memory_space<vmem>>, %arg6: memref<1x16x768xf32, #tpu.memory_space<vmem>>, %arg7: memref<16x768xf32, #tpu.memory_space<vmem>>) attributes {dimension_semantics = [#tpu.dimension_semantics<parallel>, #tpu.dimension_semantics<parallel>, #tpu.dimension_semantics<arbitrary>], iteration_bounds = array<i64: 1, 2, 2>, scalar_prefetch = 0 : i64, scratch_operands = 1 : i64, tpu.core_type = #tpu.core_type<tc>, window_params = [{transform_indices = @transform_0, window_bounds = array<i64: 1, 1, 16, 96>}, {pipeline_mode = #tpu.pipeline_mode<synchronous>, transform_indices = @transform_1, window_bounds = array<i64: 96, 768>}, {transform_indices = @transform_2, window_bounds = array<i64: 16, 768>}, {transform_indices = @transform_3, window_bounds = array<i64: 1, 16, 768>}]} {
    %c0_i32 = arith.constant 0 : i32
    %0 = arith.cmpi eq, %arg2, %c0_i32 : i32
    %1 = arith.extui %0 : i1 to i32
    %c0_i32_0 = arith.constant 0 : i32
    %2 = arith.cmpi ne, %1, %c0_i32_0 : i32
    scf.if %2 {
      %cst_11 = arith.constant 0.000000e+00 : f32
      %13 = vector.broadcast %cst_11 : f32 to vector<16x768xf32>
      %c0_12 = arith.constant 0 : index
      %c0_13 = arith.constant 0 : index
      %14 = vector.load %arg7[%c0_12, %c0_13] : memref<16x768xf32, #tpu.memory_space<vmem>>, vector<16x768xf32>
      tpu.vector_store %arg7[%c0_12, %c0_13], %13 {strides = array<i32>} : memref<16x768xf32, #tpu.memory_space<vmem>>, vector<16x768xf32>,
    } else {
    }
    %c0 = arith.constant 0 : index
    %c0_1 = arith.constant 0 : index
    %3 = vector.load %arg7[%c0, %c0_1] : memref<16x768xf32, #tpu.memory_space<vmem>>, vector<16x768xf32>
    %c0_2 = arith.constant 0 : index
    %c0_3 = arith.constant 0 : index
    %c0_4 = arith.constant 0 : index
    %c0_5 = arith.constant 0 : index
    %4 = vector.load %arg3[%c0_2, %c0_3, %c0_4, %c0_5] : memref<1x1x16x96xbf16, #tpu.memory_space<vmem>>, vector<1x1x16x96xbf16>
    %5 = vector.shape_cast %4 : vector<1x1x16x96xbf16> to vector<16x96xbf16>
    %c0_6 = arith.constant 0 : index
    %c0_7 = arith.constant 0 : index
    %6 = vector.load %arg4[%c0_6, %c0_7] : memref<96x768xbf16, #tpu.memory_space<vmem>>, vector<96x768xbf16>
    %cst = arith.constant dense<0.000000e+00> : vector<16x768xf32>
    %7 = tpu.matmul %5, %6, %cst {dimension_numbers = #tpu.dot_dimension_numbers<[1], [0], [0], [1], [0, 0, 1, 1], [], []>} : vector<16x96xbf16>, vector<96x768xbf16>, vector<16x768xf32> -> vector<16x768xf32>
    %8 = arith.addf %3, %7 : vector<16x768xf32>
    %c0_8 = arith.constant 0 : index
    %c0_9 = arith.constant 0 : index
    %9 = vector.load %arg7[%c0_8, %c0_9] : memref<16x768xf32, #tpu.memory_space<vmem>>, vector<16x768xf32>
    tpu.vector_store %arg7[%c0_8, %c0_9], %8 {strides = array<i32>} : memref<16x768xf32, #tpu.memory_space<vmem>>, vector<16x768xf32>,
    %c1_i32 = arith.constant 1 : i32
    %10 = arith.cmpi eq, %arg2, %c1_i32 : i32
    %11 = arith.extui %10 : i1 to i32
    %c0_i32_10 = arith.constant 0 : i32
    %12 = arith.cmpi ne, %11, %c0_i32_10 : i32
    scf.if %12 {
      %c0_11 = arith.constant 0 : index
      %c0_12 = arith.constant 0 : index
      %13 = vector.load %arg7[%c0_11, %c0_12] : memref<16x768xf32, #tpu.memory_space<vmem>>, vector<16x768xf32>
      %cst_13 = arith.constant 5.000000e-01 : f32
      %14 = vector.broadcast %cst_13 : f32 to vector<16x768xf32>
      %15 = arith.mulf %13, %14 : vector<16x768xf32>
      %c0_14 = arith.constant 0 : index
      %c0_15 = arith.constant 0 : index
      %16 = vector.load %arg5[%c0_14, %c0_15] : memref<16x768xf32, #tpu.memory_space<vmem>>, vector<16x768xf32>
      %17 = arith.addf %15, %16 : vector<16x768xf32>
      %c0_16 = arith.constant 0 : index
      %c0_17 = arith.constant 0 : index
      %c0_18 = arith.constant 0 : index
      %18 = vector.load %arg6[%c0_16, %c0_17, %c0_18] : memref<1x16x768xf32, #tpu.memory_space<vmem>>, vector<1x16x768xf32>
      %19 = vector.shape_cast %18 : vector<1x16x768xf32> to vector<16x768xf32>
      %20 = vector.shape_cast %17 : vector<16x768xf32> to vector<1x16x768xf32>
      tpu.vector_store %arg6[%c0_16, %c0_17, %c0_18], %20 {strides = array<i32>} : memref<1x16x768xf32, #tpu.memory_space<vmem>>, vector<1x16x768xf32>,
    } else {
    }
    return
  }
  func.func @transform_0(%arg0: i32, %arg1: i32, %arg2: i32) -> (i32, i32, i32, i32) {
    %c0_i32 = arith.constant 0 : i32
    %c0_i32_0 = arith.constant 0 : i32
    return %arg1, %arg2, %arg0, %c0_i32 : i32, i32, i32, i32
  }
  func.func @transform_1(%arg0: i32, %arg1: i32, %arg2: i32) -> (i32, i32) {
    %c0_i32 = arith.constant 0 : i32
    %c0_i32_0 = arith.constant 0 : i32
    %c0_i32_1 = arith.constant 0 : i32
    return %c0_i32, %c0_i32_0 : i32, i32
  }
  func.func @transform_2(%arg0: i32, %arg1: i32, %arg2: i32) -> (i32, i32) {
    %c0_i32 = arith.constant 0 : i32
    %c0_i32_0 = arith.constant 0 : i32
    return %arg0, %c0_i32 : i32, i32
  }
  func.func @transform_3(%arg0: i32, %arg1: i32, %arg2: i32) -> (i32, i32, i32) {
    %c0_i32 = arith.constant 0 : i32
    %c0_i32_0 = arith.constant 0 : i32
    return %arg1, %arg0, %c0_i32 : i32, i32, i32
  }
}

</mosaic_0001>

<llo_original>
// kernel: tpu_custom_call.1
$region0: #{tpu_custom_call.1}
  #allocation0 [shape = 'u32[]', space=smem, size = 0x4, offset = 0x4, fixed_abs, tag = 'smem constant byte address 0x4 - core index']
  #allocation1 [shape = 'u32[144,128]{1,0:T(1,128)}', space=vmem, size = 0x12000, scoped, tag = 'internal scratch']
  #allocation2 [shape = 'f32[16,768]{1,0:T(8,128)}', space=vmem, size = 0xc000, scoped, tag = 'scratch operand']
  %s0 = inlined_call_operand.hbm [shape: bf16[2,2,16,96], index: 0, kind: input, shape index: {}]
  %s1 = inlined_call_operand.hbm [shape: bf16[96,768], index: 1, kind: input, shape index: {}]
  %s2 = inlined_call_operand.hbm [shape: f32[16,768], index: 2, kind: input, shape index: {}]
  %s3 = inlined_call_operand.hbm [shape: f32[2,16,768], index: 3, kind: output, shape index: {}]
  %s4 = sld [smem:[#allocation0]]
  $region65: #{tpu_custom_call.1} parent=0
    _
  %s6 = ssub.s32 1, %s4
  %s7 = scalar_select 0, %s6, %s4
  $region1: #{tpu_custom_call.1} parent=0
    #allocation3 [shape = 'u8[8192]{0}', space=vmem, size = 0x2000, scoped, tag = 'input window, operand 0']
    #allocation4 [shape = 's32[2]{0}', space=sflag, size = 0x8, scoped, tag = 'scoped memory for tpu_custom_call.1']
    #allocation5 [shape = 's32[2]{0}', space=sflag, size = 0x8, scoped, tag = 'scoped memory for tpu_custom_call.1']
    #allocation6 [shape = 'u8[147456]{0}', space=vmem, size = 0x24000, scoped, tag = 'input window, operand 1, single buffered']
    #allocation7 [shape = 's32[1]{0}', space=sflag, size = 0x4, scoped, tag = 'scoped memory for tpu_custom_call.1']
    #allocation8 [shape = 'u8[49152]{0}', space=vmem, size = 0xc000, scoped, tag = 'input window, operand 2, single buffered']
    #allocation9 [shape = 'u8[98304]{0}', space=vmem, size = 0x18000, scoped, tag = 'output window, operand 0']
    %8 = vsyncpa [#allocation4], 0
    %s9 = scalar_lea.sflag [#allocation4], 1
    %10 = vsyncpa %s9, 0
    %11 = vsyncpa [#allocation7], 0
    %12 = vsyncpa [#allocation5], 0
    %s13 = scalar_lea.sflag [#allocation5], 1
    %14 = vsyncpa %s13, 0
    loop: start=0, step=1, limit=6
    $region2: #{tpu_custom_call.1} parent=1 // loop_pre_header
      _
    $region3: #{tpu_custom_call.1} parent=1 // loop_header
      %s16 = sphi 0, %s20
      %p17 = scmp.ge.s32.totalorder %s16, 6
      %s23 = sphi 0, %s42
      %s24 = sphi 0, %s38
      %s25 = sphi 0, %s34
      %s26 = sphi 0, %s23
      %s27 = sphi 0, %s24
      %s28 = sphi 0, %s25
      %s29 = sphi 0, %s26
      %s30 = sphi 0, %s27
      %s31 = sphi 0, %s28
      %s49 = sphi 0, %s51
      %s52 = sphi 0, %s49
      %s53 = sphi 0, %s52
      %s69 = sphi 0, %s53
      %s73 = sphi 0, %s73
      %s75 = sphi 0, %s73
      %s76 = sphi 0, %s75
      %s90 = sphi 0, %s76
      %s96 = sphi 0, %s98
      %s99 = sphi 0, %s96
      %s100 = sphi 0, %s99
      %s116 = sphi 0, %s100
      %s124 = sphi 0, %s126
      %s127 = sphi 0, %s124
      %s128 = sphi 0, %s127
      %s144 = sphi 0, %s128
    $region4: #{tpu_custom_call.1} parent=1 // loop_header_branch
      %19 = sbr.rel (%p17) target = $region8
    $region5: #{tpu_custom_call.1} parent=1 // loop_body
      %s21 = ssub.s32 %s16, 1
      %s22 = ssub.s32 %s16, 2
      %s32 = sadd.s32 1, %s25
      %p33 = scmp.ge.s32.totalorder %s32, 2
      %s34 = scalar_select %p33, 0, %s32
      %s35 = sadd.s32 1, %s24
      %s36 = scalar_select %p33, %s35, %s24
      %p37 = scmp.ge.s32.totalorder %s36, 2
      %s38 = scalar_select %p37, 0, %s36
      %s39 = sadd.s32 1, %s23
      %s40 = scalar_select %p37, %s39, %s23
      %p41 = scmp.ge.s32.totalorder %s40, 1
      %s42 = scalar_select %p41, 0, %s40
      %s43 = ssub.s32 %s24, %s38
      %s44 = ssub.s32 %s25, %s34
      %s45 = sor.u32 %s43, %s44
      %s46 = ssub.s32 %s23, %s42
      %s47 = sor.u32 %s45, %s46
      %p48 = scmp.eq.s32.totalorder %s47, 0
      %s50 = sadd.s32 %s49, 1
      %s51 = scalar_select %p48, %s49, %s50
      %p54 = pneg %p48
      %p55 = scmp.eq.s32.totalorder %s16, 3
      %p56 = por %p54, %p55
      %p57 = scmp.ne.s32.totalorder %s49, %s52
      %p58 = scmp.eq.s32.totalorder %s16, 0
      %p59 = por %p57, %p58
      %p60 = scmp.ne.s32.totalorder %s49, %s52
      %p61 = scmp.eq.s32.totalorder %s21, 3
      %p62 = por %p60, %p61
      %p63 = scmp.ne.s32.totalorder %s52, %s53
      %p64 = scmp.eq.s32.totalorder %s21, 0
      %p65 = por %p63, %p64
      %p66 = scmp.ne.s32.totalorder %s52, %s53
      %p67 = scmp.eq.s32.totalorder %s22, 3
      %p68 = por %p66, %p67
      %p70 = scmp.ne.s32.totalorder %s53, %s69
      %p71 = scmp.eq.s32.totalorder %s22, 0
      %p72 = por %p70, %p71
      %s74 = sadd.s32 %s73, 1
      %p77 = scmp.eq.s32.totalorder %s16, 3
      %p78 = scmp.ne.s32.totalorder %s73, %s75
      %p79 = scmp.eq.s32.totalorder %s16, 0
      %p80 = por %p78, %p79
      %p81 = scmp.ne.s32.totalorder %s73, %s75
      %p82 = scmp.eq.s32.totalorder %s21, 3
      %p83 = por %p81, %p82
      %p84 = scmp.ne.s32.totalorder %s75, %s76
      %p85 = scmp.eq.s32.totalorder %s21, 0
      %p86 = por %p84, %p85
      %p87 = scmp.ne.s32.totalorder %s75, %s76
      %p88 = scmp.eq.s32.totalorder %s22, 3
      %p89 = por %p87, %p88
      %p91 = scmp.ne.s32.totalorder %s76, %s90
      %p92 = scmp.eq.s32.totalorder %s22, 0
      %p93 = por %p91, %p92
      %s94 = ssub.s32 %s23, %s42
      %p95 = scmp.eq.s32.totalorder %s94, 0
      %s97 = sadd.s32 %s96, 1
      %s98 = scalar_select %p95, %s96, %s97
      %p101 = pneg %p95
      %p102 = scmp.eq.s32.totalorder %s16, 3
      %p103 = por %p101, %p102
      %p104 = scmp.ne.s32.totalorder %s96, %s99
      %p105 = scmp.eq.s32.totalorder %s16, 0
      %p106 = por %p104, %p105
      %p107 = scmp.ne.s32.totalorder %s96, %s99
      %p108 = scmp.eq.s32.totalorder %s21, 3
      %p109 = por %p107, %p108
      %p110 = scmp.ne.s32.totalorder %s99, %s100
      %p111 = scmp.eq.s32.totalorder %s21, 0
      %p112 = por %p110, %p111
      %p113 = scmp.ne.s32.totalorder %s99, %s100
      %p114 = scmp.eq.s32.totalorder %s22, 3
      %p115 = por %p113, %p114
      %p117 = scmp.ne.s32.totalorder %s100, %s116
      %p118 = scmp.eq.s32.totalorder %s22, 0
      %p119 = por %p117, %p118
      %s120 = ssub.s32 %s24, %s38
      %s121 = ssub.s32 %s23, %s42
      %s122 = sor.u32 %s120, %s121
      %p123 = scmp.eq.s32.totalorder %s122, 0
      %s125 = sadd.s32 %s124, 1
      %s126 = scalar_select %p123, %s124, %s125
      %p129 = pneg %p123
      %p130 = scmp.eq.s32.totalorder %s16, 3
      %p131 = por %p129, %p130
      %p132 = scmp.ne.s32.totalorder %s124, %s127
      %p133 = scmp.eq.s32.totalorder %s16, 0
      %p134 = por %p132, %p133
      %p135 = scmp.ne.s32.totalorder %s124, %s127
      %p136 = scmp.eq.s32.totalorder %s21, 3
      %p137 = por %p135, %p136
      %p138 = scmp.ne.s32.totalorder %s127, %s128
      %p139 = scmp.eq.s32.totalorder %s21, 0
      %p140 = por %p138, %p139
      %p141 = scmp.ne.s32.totalorder %s127, %s128
      %p142 = scmp.eq.s32.totalorder %s22, 3
      %p143 = por %p141, %p142
      %p145 = scmp.ne.s32.totalorder %s128, %s144
      %p146 = scmp.eq.s32.totalorder %s22, 0
      %p147 = por %p145, %p146
      %p148 = scmp.le.s32.totalorder 1, %s16
      %p149 = scmp.lt.s32.totalorder %s16, 5
      %p150 = pnand %p148, %p149
      %p151 = pneg %p150
      // Predicated region
      $region9: #{tpu_custom_call.1} parent=5 // pred_check
        _
      $region10: #{tpu_custom_call.1} parent=5 // pred_check_branch
        %153 = sbr.rel (%p150) target = $region12
      $region11: #{tpu_custom_call.1} parent=5 // pred_region
        %s154 = ssub.s32 %s16, 1
        // Predicated region
        $region13: #{tpu_custom_call.1} parent=11 // pred_check
          %p155 = pneg %p86
        $region14: #{tpu_custom_call.1} parent=11 // pred_check_branch
          %157 = sbr.rel (%p155) target = $region16
        $region15: #{tpu_custom_call.1} parent=11 // pred_region
          %s159 = ssub.s32 4608, 4608
          %160 = vsyncadd [#allocation7], %s159
          %s161 = sshll.u32 [#allocation6], 4
          %s162 = int_to_ptr.vmem [resolvable:$true] %s161
          %167 = dma.hbm_to_vmem [thread:$0]  %s1, 4608, %s162, [#allocation7], 384, 384, 24
        $region16: #{tpu_custom_call.1} parent=11 // pred_fallthru
          _
        // Predicated region
        $region17: #{tpu_custom_call.1} parent=11 // pred_check
          %p168 = pneg %p112
        $region18: #{tpu_custom_call.1} parent=11 // pred_check_branch
          %170 = sbr.rel (%p168) target = $region20
        $region19: #{tpu_custom_call.1} parent=11 // pred_region
          %s171 = smul.u32 2, %s26
          %s173 = ssub.s32 1536, 1536
          %174 = vsyncadd [#allocation7], %s173
          %s175 = smul.addr %s171, 6
          %s176 = smul.addr %s175, 128
          %s177 = scalar_lea.hbm %s2, %s176
          %s178 = sshll.u32 [#allocation8], 4
          %s179 = int_to_ptr.vmem [resolvable:$true] %s178
          %184 = dma.hbm_to_vmem [thread:$0]  %s177, 1536, %s179, [#allocation7], 768, 768, 48
        $region20: #{tpu_custom_call.1} parent=11 // pred_fallthru
          _
      $region12: #{tpu_custom_call.1} parent=5 // pred_fallthru
        _
      %p185 = scmp.lt.s32.totalorder %s16, 4
      // Predicated region
      $region21: #{tpu_custom_call.1} parent=5 // pred_check
        %p186 = pneg %p185
      $region22: #{tpu_custom_call.1} parent=5 // pred_check_branch
        %188 = sbr.rel (%p186) target = $region24
      $region23: #{tpu_custom_call.1} parent=5 // pred_region
        // Predicated region
        $region25: #{tpu_custom_call.1} parent=23 // pred_check
          %p189 = pneg %p59
        $region26: #{tpu_custom_call.1} parent=23 // pred_check_branch
          %191 = sbr.rel (%p189) target = $region28
        $region27: #{tpu_custom_call.1} parent=23 // pred_region
          %s192 = sand.u32 %s49, 1
          %s193 = scalar_lea.sflag [#allocation4], %s192
          %s194 = sand.u32 %s49, 1
          %s195 = smul.addr %s194, 8
          %s196 = scalar_lea.vmem [#allocation3], %s195
          %s197 = smul.u32 2, %s23
          %s199 = ssub.s32 128, 128
          %200 = vsyncadd %s193, %s199
          %s201 = smul.addr %s25, 2
          %s202 = sadd.s32 %s197, %s201
          %s203 = smul.addr %s24, 4
          %s204 = sadd.s32 %s202, %s203
          %s205 = smul.addr %s204, 64
          %s206 = scalar_lea.hbm %s0, %s205
          %s207 = sshll.u32 %s196, 4
          %s208 = int_to_ptr.vmem [resolvable:$true] %s207
          %213 = dma.hbm_to_vmem [thread:$0]  %s206, 128, %s208, %s193, 64, 64, 4
        $region28: #{tpu_custom_call.1} parent=23 // pred_fallthru
          _
      $region24: #{tpu_custom_call.1} parent=5 // pred_fallthru
        _
      %p214 = scmp.le.s32.totalorder 1, %s16
      %p215 = scmp.lt.s32.totalorder %s16, 5
      %p216 = pnand %p214, %p215
      %p217 = pneg %p216
      // Predicated region
      $region29: #{tpu_custom_call.1} parent=5 // pred_check
        _
      $region30: #{tpu_custom_call.1} parent=5 // pred_check_branch
        %219 = sbr.rel (%p216) target = $region32
      $region31: #{tpu_custom_call.1} parent=5 // pred_region
        %s220 = ssub.s32 %s16, 1
        %s221 = sand.u32 %s52, 1
        %s222 = scalar_lea.sflag [#allocation4], %s221
        %s223 = sand.u32 %s52, 1
        %s224 = smul.addr %s223, 8
        %s225 = scalar_lea.vmem [#allocation3], %s224
        // Predicated region
        $region33: #{tpu_custom_call.1} parent=31 // pred_check
          %p226 = pneg %p65
        $region34: #{tpu_custom_call.1} parent=31 // pred_check_branch
          %228 = sbr.rel (%p226) target = $region36
        $region35: #{tpu_custom_call.1} parent=31 // pred_region
          %229 = dma.done %s222, 128
        $region36: #{tpu_custom_call.1} parent=31 // pred_fallthru
          _
        // Predicated region
        $region37: #{tpu_custom_call.1} parent=31 // pred_check
          %p230 = pneg %p86
        $region38: #{tpu_custom_call.1} parent=31 // pred_check_branch
          %232 = sbr.rel (%p230) target = $region40
        $region39: #{tpu_custom_call.1} parent=31 // pred_region
          %233 = dma.done [#allocation7], 4608
        $region40: #{tpu_custom_call.1} parent=31 // pred_fallthru
          _
        // Predicated region
        $region41: #{tpu_custom_call.1} parent=31 // pred_check
          %p234 = pneg %p112
        $region42: #{tpu_custom_call.1} parent=31 // pred_check_branch
          %236 = sbr.rel (%p234) target = $region44
        $region43: #{tpu_custom_call.1} parent=31 // pred_region
          %237 = dma.done [#allocation7], 1536
        $region44: #{tpu_custom_call.1} parent=31 // pred_fallthru
          _
        %s238 = sand.u32 %s52, 1
        %s239 = scalar_lea.sflag [#allocation4], %s238
        %s240 = sand.u32 %s52, 1
        %s241 = smul.addr %s240, 8
        %s242 = scalar_lea.vmem [#allocation3], %s241
        %p243 = pneg %p65
        %p244 = pneg %p62
        %p245 = pneg %p86
        %p246 = pneg %p83
        %p247 = pneg %p112
        %p248 = pneg %p109
        %p249 = pneg %p140
        %p250 = pneg %p137
        %s251 = sand.u32 %s127, 1
        %s252 = scalar_lea.sflag [#allocation5], %s251
        %s253 = sand.u32 %s127, 1
        %s254 = smul.addr %s253, 96
        %s255 = scalar_lea.vmem [#allocation9], %s254
        %s256 = smul.u32 2, %s26
        %s257 = smul.u32 2, %s26
        %s258 = smul.u32 2, %s26
        %p260 = scmp.eq.s32.totalorder %s28, 0
        // Predicated region
        $region45: #{tpu_custom_call.1} parent=31 // pred_check
          %p261 = pneg %p260
        $region46: #{tpu_custom_call.1} parent=31 // pred_check_branch
          %263 = sbr.rel (%p261) target = $region48
        $region47: #{tpu_custom_call.1} parent=31 // pred_region
          %264 = vst [vmem:[#allocation2] sm:$0xff] 0.0
          %265 = vst [vmem:[#allocation2 + $0x8] sm:$0xff] 0.0
          %266 = vst [vmem:[#allocation2 + $0x10] sm:$0xff] 0.0
          %267 = vst [vmem:[#allocation2 + $0x18] sm:$0xff] 0.0
          %268 = vst [vmem:[#allocation2 + $0x20] sm:$0xff] 0.0
          %269 = vst [vmem:[#allocation2 + $0x28] sm:$0xff] 0.0
          %270 = vst [vmem:[#allocation2 + $0x30] sm:$0xff] 0.0
          %271 = vst [vmem:[#allocation2 + $0x38] sm:$0xff] 0.0
          %272 = vst [vmem:[#allocation2 + $0x40] sm:$0xff] 0.0
          %273 = vst [vmem:[#allocation2 + $0x48] sm:$0xff] 0.0
          %274 = vst [vmem:[#allocation2 + $0x50] sm:$0xff] 0.0
          %275 = vst [vmem:[#allocation2 + $0x58] sm:$0xff] 0.0
        $region48: #{tpu_custom_call.1} parent=31 // pred_fallthru
          _
        %v276 = vld [vmem:[#allocation2] sm:$0xff]
        %v277 = vld [vmem:[#allocation2 + $0x8] sm:$0xff]
        %v278 = vld [vmem:[#allocation2 + $0x10] sm:$0xff]
        %v279 = vld [vmem:[#allocation2 + $0x18] sm:$0xff]
        %v280 = vld [vmem:[#allocation2 + $0x20] sm:$0xff]
        %v281 = vld [vmem:[#allocation2 + $0x28] sm:$0xff]
        %v282 = vld [vmem:[#allocation2 + $0x30] sm:$0xff]
        %v283 = vld [vmem:[#allocation2 + $0x38] sm:$0xff]
        %v284 = vld [vmem:[#allocation2 + $0x40] sm:$0xff]
        %v285 = vld [vmem:[#allocation2 + $0x48] sm:$0xff]
        %v286 = vld [vmem:[#allocation2 + $0x50] sm:$0xff]
        %v287 = vld [vmem:[#allocation2 + $0x58] sm:$0xff]
        %v288 = vld [vmem:[%s225] sm:$0xf]
        %v289 = vld [vmem:[%s225 + $0x4] sm:$0xf]
        %v290 = vld [vmem:[#allocation6] sm:$0xff]
        %v291 = vld [vmem:[#allocation6 + $0x8] sm:$0xff]
        %v292 = vld [vmem:[#allocation6 + $0x10] sm:$0xff]
        %v293 = vld [vmem:[#allocation6 + $0x18] sm:$0xff]
        %v294 = vld [vmem:[#allocation6 + $0x20] sm:$0xff]
        %v295 = vld [vmem:[#allocation6 + $0x28] sm:$0xff]
        %v296 = vld [vmem:[#allocation6 + $0x30] sm:$0xff]
        %v297 = vld [vmem:[#allocation6 + $0x38] sm:$0xff]
        %v298 = vld [vmem:[#allocation6 + $0x40] sm:$0xff]
        %v299 = vld [vmem:[#allocation6 + $0x48] sm:$0xff]
        %v300 = vld [vmem:[#allocation6 + $0x50] sm:$0xff]
        %v301 = vld [vmem:[#allocation6 + $0x58] sm:$0xff]
        %v302 = vld [vmem:[#allocation6 + $0x60] sm:$0xff]
        %v303 = vld [vmem:[#allocation6 + $0x68] sm:$0xff]
        %v304 = vld [vmem:[#allocation6 + $0x70] sm:$0xff]
        %v305 = vld [vmem:[#allocation6 + $0x78] sm:$0xff]
        %v306 = vld [vmem:[#allocation6 + $0x80] sm:$0xff]
        %v307 = vld [vmem:[#allocation6 + $0x88] sm:$0xff]
        %v308 = vld [vmem:[#allocation6 + $0x90] sm:$0xff]
        %v309 = vld [vmem:[#allocation6 + $0x98] sm:$0xff]
        %v310 = vld [vmem:[#allocation6 + $0xa0] sm:$0xff]
        %v311 = vld [vmem:[#allocation6 + $0xa8] sm:$0xff]
        %v312 = vld [vmem:[#allocation6 + $0xb0] sm:$0xff]
        %v313 = vld [vmem:[#allocation6 + $0xb8] sm:$0xff]
        %v314 = vld [vmem:[#allocation6 + $0xc0] sm:$0xff]
        %v315 = vld [vmem:[#allocation6 + $0xc8] sm:$0xff]
        %v316 = vld [vmem:[#allocation6 + $0xd0] sm:$0xff]
        %v317 = vld [vmem:[#allocation6 + $0xd8] sm:$0xff]
        %v318 = vld [vmem:[#allocation6 + $0xe0] sm:$0xff]
        %v319 = vld [vmem:[#allocation6 + $0xe8] sm:$0xff]
        %v320 = vld [vmem:[#allocation6 + $0xf0] sm:$0xff]
        %v321 = vld [vmem:[#allocation6 + $0xf8] sm:$0xff]
        %v322 = vld [vmem:[#allocation6 + $0x100] sm:$0xff]
        %v323 = vld [vmem:[#allocation6 + $0x108] sm:$0xff]
        %v324 = vld [vmem:[#allocation6 + $0x110] sm:$0xff]
        %v325 = vld [vmem:[#allocation6 + $0x118] sm:$0xff]
        %v328 = vunpack.c.l.b16 %v288
        %v329 = vunpack.c.l.b16 %v289
        %v330 = vpack.c.b16 %v329, %v328
        %v367 = vunpack.c.l.b16 %v290
        %v368 = vunpack.c.h.b16 %v290
        %v369 = vunpack.c.l.b16 %v291
        %v370 = vunpack.c.h.b16 %v291
        %v371 = vunpack.c.l.b16 %v292
        %v372 = vunpack.c.h.b16 %v292
        %v373 = vunpack.c.l.b16 %v293
        %v374 = vunpack.c.h.b16 %v293
        %v375 = vunpack.c.l.b16 %v294
        %v376 = vunpack.c.h.b16 %v294
        %v377 = vunpack.c.l.b16 %v295
        %v378 = vunpack.c.h.b16 %v295
        %v379 = vunpack.c.l.b16 %v296
        %v380 = vunpack.c.h.b16 %v296
        %v381 = vunpack.c.l.b16 %v297
        %v382 = vunpack.c.h.b16 %v297
        %v383 = vunpack.c.l.b16 %v298
        %v384 = vunpack.c.h.b16 %v298
        %v385 = vunpack.c.l.b16 %v299
        %v386 = vunpack.c.h.b16 %v299
        %v387 = vunpack.c.l.b16 %v300
        %v388 = vunpack.c.h.b16 %v300
        %v389 = vunpack.c.l.b16 %v301
        %v390 = vunpack.c.h.b16 %v301
        %v391 = vunpack.c.l.b16 %v302
        %v392 = vunpack.c.h.b16 %v302
        %v393 = vunpack.c.l.b16 %v303
        %v394 = vunpack.c.h.b16 %v303
        %v395 = vunpack.c.l.b16 %v304
        %v396 = vunpack.c.h.b16 %v304
        %v397 = vunpack.c.l.b16 %v305
        %v398 = vunpack.c.h.b16 %v305
        %v399 = vunpack.c.l.b16 %v306
        %v400 = vunpack.c.h.b16 %v306
        %v401 = vunpack.c.l.b16 %v307
        %v402 = vunpack.c.h.b16 %v307
        %v403 = vunpack.c.l.b16 %v308
        %v404 = vunpack.c.h.b16 %v308
        %v405 = vunpack.c.l.b16 %v309
        %v406 = vunpack.c.h.b16 %v309
        %v407 = vunpack.c.l.b16 %v310
        %v408 = vunpack.c.h.b16 %v310
        %v409 = vunpack.c.l.b16 %v311
        %v410 = vunpack.c.h.b16 %v311
        %v411 = vunpack.c.l.b16 %v312
        %v412 = vunpack.c.h.b16 %v312
        %v413 = vunpack.c.l.b16 %v313
        %v414 = vunpack.c.h.b16 %v313
        %v415 = vunpack.c.l.b16 %v314
        %v416 = vunpack.c.h.b16 %v314
        %v417 = vunpack.c.l.b16 %v315
        %v418 = vunpack.c.h.b16 %v315
        %v419 = vunpack.c.l.b16 %v316
        %v420 = vunpack.c.h.b16 %v316
        %v421 = vunpack.c.l.b16 %v317
        %v422 = vunpack.c.h.b16 %v317
        %v423 = vunpack.c.l.b16 %v318
        %v424 = vunpack.c.h.b16 %v318
        %v425 = vunpack.c.l.b16 %v319
        %v426 = vunpack.c.h.b16 %v319
        %v427 = vunpack.c.l.b16 %v320
        %v428 = vunpack.c.h.b16 %v320
        %v429 = vunpack.c.l.b16 %v321
        %v430 = vunpack.c.h.b16 %v321
        %v431 = vunpack.c.l.b16 %v322
        %v432 = vunpack.c.h.b16 %v322
        %v433 = vunpack.c.l.b16 %v323
        %v434 = vunpack.c.h.b16 %v323
        %v435 = vunpack.c.l.b16 %v324
        %v436 = vunpack.c.h.b16 %v324
        %v437 = vunpack.c.l.b16 %v325
        %v438 = vunpack.c.h.b16 %v325
        %v439 = vpack.c.b16 %v373, %v367
        %v440 = vpack.c.b16 %v374, %v368
        %v441 = vpack.c.b16 %v375, %v369
        %v442 = vpack.c.b16 %v376, %v370
        %v443 = vpack.c.b16 %v377, %v371
        %v444 = vpack.c.b16 %v378, %v372
        %v445 = vpack.c.b16 %v385, %v379
        %v446 = vpack.c.b16 %v386, %v380
        %v447 = vpack.c.b16 %v387, %v381
        %v448 = vpack.c.b16 %v388, %v382
        %v449 = vpack.c.b16 %v389, %v383
        %v450 = vpack.c.b16 %v390, %v384
        %v451 = vpack.c.b16 %v397, %v391
        %v452 = vpack.c.b16 %v398, %v392
        %v453 = vpack.c.b16 %v399, %v393
        %v454 = vpack.c.b16 %v400, %v394
        %v455 = vpack.c.b16 %v401, %v395
        %v456 = vpack.c.b16 %v402, %v396
        %v457 = vpack.c.b16 %v409, %v403
        %v458 = vpack.c.b16 %v410, %v404
        %v459 = vpack.c.b16 %v411, %v405
        %v460 = vpack.c.b16 %v412, %v406
        %v461 = vpack.c.b16 %v413, %v407
        %v462 = vpack.c.b16 %v414, %v408
        %v463 = vpack.c.b16 %v421, %v415
        %v464 = vpack.c.b16 %v422, %v416
        %v465 = vpack.c.b16 %v423, %v417
        %v466 = vpack.c.b16 %v424, %v418
        %v467 = vpack.c.b16 %v425, %v419
        %v468 = vpack.c.b16 %v426, %v420
        %v469 = vpack.c.b16 %v433, %v427
        %v470 = vpack.c.b16 %v434, %v428
        %v471 = vpack.c.b16 %v435, %v429
        %v472 = vpack.c.b16 %v436, %v430
        %v473 = vpack.c.b16 %v437, %v431
        %v474 = vpack.c.b16 %v438, %v432
        %vm511 = vcmask 785408
        %v513 = vsel %vm511, %v330, 0
        %515 = vmatprep.subr.bf16.mxu0 %v440
        %516 = vmatpush1.bf16.msra.mxu0 %v439
        %517 = vmatprep.subr.bf16.mxu0 %v446
        %518 = vmatpush1.bf16.msra.mxu0 %v445
        %519 = vmatprep.subr.bf16.mxu0 %v452
        %520 = vmatpush1.bf16.msra.mxu0 %v451
        %521 = vmatprep.subr.bf16.mxu0 %v458
        %522 = vmatpush1.bf16.msra.mxu0 %v457
        %523 = vmatprep.subr.bf16.mxu0 %v464
        %524 = vmatpush1.bf16.msra.mxu0 %v463
        %525 = vmatprep.subr.bf16.mxu0 %v470
        %526 = vmatpush1.bf16.msra.mxu0 %v469
        %527 = vmatprep.subr.bf16.mxu0 0
        %528 = vmatpush1.bf16.msra.mxu0 0
        %529 = vmatprep.subr.bf16.mxu0 0
        %530 = vmatpush1.bf16.msra.mxu0 0
        %531 = vmatprep.subr.bf16.mxu0 0
        %532 = vmatpush1.bf16.msra.mxu0 0
        %533 = vmatprep.subr.bf16.mxu0 0
        %534 = vmatpush1.bf16.msra.mxu0 0
        %535 = vmatprep.subr.bf16.mxu0 0
        %536 = vmatpush1.bf16.msra.mxu0 0
        %537 = vmatprep.subr.bf16.mxu0 0
        %538 = vmatpush1.bf16.msra.mxu0 0
        %539 = vmatprep.subr.bf16.mxu0 0
        %540 = vmatpush1.bf16.msra.mxu0 0
        %541 = vmatprep.subr.bf16.mxu0 0
        %542 = vmatpush1.bf16.msra.mxu0 0
        %543 = vmatprep.subr.bf16.mxu0 0
        %544 = vmatpush1.bf16.msra.mxu0 0
        %545 = vmatprep.subr.bf16.mxu0 0
        %546 = vmatpush1.bf16.msra.mxu0 0
        %547 = vmatprep.mubr.bf16.mxu0 0
        %548 = vmatmul.mubr.bf16.gmra.mrb[0].mxu0 %v513
        %v549 = vpop.f32.mrb[0].mxu0
        %v550 = vadd.f32 0.0, %v549
        %v551 = vpop.f32.mrb[0].mxu0
        %v552 = vadd.f32 0.0, %v551
        %v553 = vpop.f32.mrb[0].mxu0
        %v554 = vadd.f32 0.0, %v553
        %v555 = vpop.f32.mrb[0].mxu0
        %v556 = vadd.f32 0.0, %v555
        %557 = vdwg.mxu0
        %558 = vmatprep.subr.bf16.mxu0 %v442
        %559 = vmatpush1.bf16.msra.mxu0 %v441
        %560 = vmatprep.subr.bf16.mxu0 %v448
        %561 = vmatpush1.bf16.msra.mxu0 %v447
        %562 = vmatprep.subr.bf16.mxu0 %v454
        %563 = vmatpush1.bf16.msra.mxu0 %v453
        %564 = vmatprep.subr.bf16.mxu0 %v460
        %565 = vmatpush1.bf16.msra.mxu0 %v459
        %566 = vmatprep.subr.bf16.mxu0 %v466
        %567 = vmatpush1.bf16.msra.mxu0 %v465
        %568 = vmatprep.subr.bf16.mxu0 %v472
        %569 = vmatpush1.bf16.msra.mxu0 %v471
        %570 = vmatprep.subr.bf16.mxu0 0
        %571 = vmatpush1.bf16.msra.mxu0 0
        %572 = vmatprep.subr.bf16.mxu0 0
        %573 = vmatpush1.bf16.msra.mxu0 0
        %574 = vmatprep.subr.bf16.mxu0 0
        %575 = vmatpush1.bf16.msra.mxu0 0
        %576 = vmatprep.subr.bf16.mxu0 0
        %577 = vmatpush1.bf16.msra.mxu0 0
        %578 = vmatprep.subr.bf16.mxu0 0
        %579 = vmatpush1.bf16.msra.mxu0 0
        %580 = vmatprep.subr.bf16.mxu0 0
        %581 = vmatpush1.bf16.msra.mxu0 0
        %582 = vmatprep.subr.bf16.mxu0 0
        %583 = vmatpush1.bf16.msra.mxu0 0
        %584 = vmatprep.subr.bf16.mxu0 0
        %585 = vmatpush1.bf16.msra.mxu0 0
        %586 = vmatprep.subr.bf16.mxu0 0
        %587 = vmatpush1.bf16.msra.mxu0 0
        %588 = vmatprep.subr.bf16.mxu0 0
        %589 = vmatpush1.bf16.msra.mxu0 0
        %590 = vmatprep.mubr.bf16.mxu0 0
        %591 = vmatmul.mubr.bf16.gmra.mrb[0].mxu0 %v513
        %v592 = vpop.f32.mrb[0].mxu0
        %v593 = vadd.f32 0.0, %v592
        %v594 = vpop.f32.mrb[0].mxu0
        %v595 = vadd.f32 0.0, %v594
        %v596 = vpop.f32.mrb[0].mxu0
        %v597 = vadd.f32 0.0, %v596
        %v598 = vpop.f32.mrb[0].mxu0
        %v599 = vadd.f32 0.0, %v598
        %600 = vdwg.mxu0
        %601 = vmatprep.subr.bf16.mxu0 %v444
        %602 = vmatpush1.bf16.msra.mxu0 %v443
        %603 = vmatprep.subr.bf16.mxu0 %v450
        %604 = vmatpush1.bf16.msra.mxu0 %v449
        %605 = vmatprep.subr.bf16.mxu0 %v456
        %606 = vmatpush1.bf16.msra.mxu0 %v455
        %607 = vmatprep.subr.bf16.mxu0 %v462
        %608 = vmatpush1.bf16.msra.mxu0 %v461
        %609 = vmatprep.subr.bf16.mxu0 %v468
        %610 = vmatpush1.bf16.msra.mxu0 %v467
        %611 = vmatprep.subr.bf16.mxu0 %v474
        %612 = vmatpush1.bf16.msra.mxu0 %v473
        %613 = vmatprep.subr.bf16.mxu0 0
        %614 = vmatpush1.bf16.msra.mxu0 0
        %615 = vmatprep.subr.bf16.mxu0 0
        %616 = vmatpush1.bf16.msra.mxu0 0
        %617 = vmatprep.subr.bf16.mxu0 0
        %618 = vmatpush1.bf16.msra.mxu0 0
        %619 = vmatprep.subr.bf16.mxu0 0
        %620 = vmatpush1.bf16.msra.mxu0 0
        %621 = vmatprep.subr.bf16.mxu0 0
        %622 = vmatpush1.bf16.msra.mxu0 0
        %623 = vmatprep.subr.bf16.mxu0 0
        %624 = vmatpush1.bf16.msra.mxu0 0
        %625 = vmatprep.subr.bf16.mxu0 0
        %626 = vmatpush1.bf16.msra.mxu0 0
        %627 = vmatprep.subr.bf16.mxu0 0
        %628 = vmatpush1.bf16.msra.mxu0 0
        %629 = vmatprep.subr.bf16.mxu0 0
        %630 = vmatpush1.bf16.msra.mxu0 0
        %631 = vmatprep.subr.bf16.mxu0 0
        %632 = vmatpush1.bf16.msra.mxu0 0
        %633 = vmatprep.mubr.bf16.mxu0 0
        %634 = vmatmul.mubr.bf16.gmra.mrb[0].mxu0 %v513
        %v635 = vpop.f32.mrb[0].mxu0
        %v636 = vadd.f32 0.0, %v635
        %v637 = vpop.f32.mrb[0].mxu0
        %v638 = vadd.f32 0.0, %v637
        %v639 = vpop.f32.mrb[0].mxu0
        %v640 = vadd.f32 0.0, %v639
        %v641 = vpop.f32.mrb[0].mxu0
        %v642 = vadd.f32 0.0, %v641
        %643 = vdwg.mxu0
        %v644 = vadd.f32 %v276, %v550
        %v645 = vadd.f32 %v277, %v552
        %v646 = vadd.f32 %v278, %v593
        %v647 = vadd.f32 %v279, %v595
        %v648 = vadd.f32 %v280, %v636
        %v649 = vadd.f32 %v281, %v638
        %v650 = vadd.f32 %v282, %v554
        %v651 = vadd.f32 %v283, %v556
        %v652 = vadd.f32 %v284, %v597
        %v653 = vadd.f32 %v285, %v599
        %v654 = vadd.f32 %v286, %v640
        %v655 = vadd.f32 %v287, %v642
        %656 = vst [vmem:[#allocation2] sm:$0xff] %v644
        %657 = vst [vmem:[#allocation2 + $0x8] sm:$0xff] %v645
        %658 = vst [vmem:[#allocation2 + $0x10] sm:$0xff] %v646
        %659 = vst [vmem:[#allocation2 + $0x18] sm:$0xff] %v647
        %660 = vst [vmem:[#allocation2 + $0x20] sm:$0xff] %v648
        %661 = vst [vmem:[#allocation2 + $0x28] sm:$0xff] %v649
        %662 = vst [vmem:[#allocation2 + $0x30] sm:$0xff] %v650
        %663 = vst [vmem:[#allocation2 + $0x38] sm:$0xff] %v651
        %664 = vst [vmem:[#allocation2 + $0x40] sm:$0xff] %v652
        %665 = vst [vmem:[#allocation2 + $0x48] sm:$0xff] %v653
        %666 = vst [vmem:[#allocation2 + $0x50] sm:$0xff] %v654
        %667 = vst [vmem:[#allocation2 + $0x58] sm:$0xff] %v655
        %p668 = scmp.eq.s32.totalorder %s28, 1
        // Predicated region
        $region49: #{tpu_custom_call.1} parent=31 // pred_check
          %p669 = pneg %p668
        $region50: #{tpu_custom_call.1} parent=31 // pred_check_branch
          %671 = sbr.rel (%p669) target = $region52
        $region51: #{tpu_custom_call.1} parent=31 // pred_region
          %v672 = vld [vmem:[#allocation2] sm:$0xff]
          %v673 = vld [vmem:[#allocation2 + $0x8] sm:$0xff]
          %v674 = vld [vmem:[#allocation2 + $0x10] sm:$0xff]
          %v675 = vld [vmem:[#allocation2 + $0x18] sm:$0xff]
          %v676 = vld [vmem:[#allocation2 + $0x20] sm:$0xff]
          %v677 = vld [vmem:[#allocation2 + $0x28] sm:$0xff]
          %v678 = vld [vmem:[#allocation2 + $0x30] sm:$0xff]
          %v679 = vld [vmem:[#allocation2 + $0x38] sm:$0xff]
          %v680 = vld [vmem:[#allocation2 + $0x40] sm:$0xff]
          %v681 = vld [vmem:[#allocation2 + $0x48] sm:$0xff]
          %v682 = vld [vmem:[#allocation2 + $0x50] sm:$0xff]
          %v683 = vld [vmem:[#allocation2 + $0x58] sm:$0xff]
          %v684 = vmul.f32 %v672, 0.5
          %v685 = vmul.f32 %v673, 0.5
          %v686 = vmul.f32 %v674, 0.5
          %v687 = vmul.f32 %v675, 0.5
          %v688 = vmul.f32 %v676, 0.5
          %v689 = vmul.f32 %v677, 0.5
          %v690 = vmul.f32 %v678, 0.5
          %v691 = vmul.f32 %v679, 0.5
          %v692 = vmul.f32 %v680, 0.5
          %v693 = vmul.f32 %v681, 0.5
          %v694 = vmul.f32 %v682, 0.5
          %v695 = vmul.f32 %v683, 0.5
          %v696 = vld [vmem:[#allocation8] sm:$0xff]
          %v697 = vld [vmem:[#allocation8 + $0x8] sm:$0xff]
          %v698 = vld [vmem:[#allocation8 + $0x10] sm:$0xff]
          %v699 = vld [vmem:[#allocation8 + $0x18] sm:$0xff]
          %v700 = vld [vmem:[#allocation8 + $0x20] sm:$0xff]
          %v701 = vld [vmem:[#allocation8 + $0x28] sm:$0xff]
          %v702 = vld [vmem:[#allocation8 + $0x30] sm:$0xff]
          %v703 = vld [vmem:[#allocation8 + $0x38] sm:$0xff]
          %v704 = vld [vmem:[#allocation8 + $0x40] sm:$0xff]
          %v705 = vld [vmem:[#allocation8 + $0x48] sm:$0xff]
          %v706 = vld [vmem:[#allocation8 + $0x50] sm:$0xff]
          %v707 = vld [vmem:[#allocation8 + $0x58] sm:$0xff]
          %v708 = vadd.f32 %v684, %v696
          %v709 = vadd.f32 %v685, %v697
          %v710 = vadd.f32 %v686, %v698
          %v711 = vadd.f32 %v687, %v699
          %v712 = vadd.f32 %v688, %v700
          %v713 = vadd.f32 %v689, %v701
          %v714 = vadd.f32 %v690, %v702
          %v715 = vadd.f32 %v691, %v703
          %v716 = vadd.f32 %v692, %v704
          %v717 = vadd.f32 %v693, %v705
          %v718 = vadd.f32 %v694, %v706
          %v719 = vadd.f32 %v695, %v707
          %720 = vst [vmem:[%s255] sm:$0xff] %v708
          %721 = vst [vmem:[%s255 + $0x8] sm:$0xff] %v709
          %722 = vst [vmem:[%s255 + $0x10] sm:$0xff] %v710
          %723 = vst [vmem:[%s255 + $0x18] sm:$0xff] %v711
          %724 = vst [vmem:[%s255 + $0x20] sm:$0xff] %v712
          %725 = vst [vmem:[%s255 + $0x28] sm:$0xff] %v713
          %726 = vst [vmem:[%s255 + $0x30] sm:$0xff] %v714
          %727 = vst [vmem:[%s255 + $0x38] sm:$0xff] %v715
          %728 = vst [vmem:[%s255 + $0x40] sm:$0xff] %v716
          %729 = vst [vmem:[%s255 + $0x48] sm:$0xff] %v717
          %730 = vst [vmem:[%s255 + $0x50] sm:$0xff] %v718
          %731 = vst [vmem:[%s255 + $0x58] sm:$0xff] %v719
        $region52: #{tpu_custom_call.1} parent=31 // pred_fallthru
          _
        %s732 = sand.u32 %s127, 1
        %s733 = scalar_lea.sflag [#allocation5], %s732
        %s734 = sand.u32 %s127, 1
        %s735 = smul.addr %s734, 96
        %s736 = scalar_lea.vmem [#allocation9], %s735
        // Predicated region
        $region53: #{tpu_custom_call.1} parent=31 // pred_check
          %p737 = pneg %p137
        $region54: #{tpu_custom_call.1} parent=31 // pred_check_branch
          %739 = sbr.rel (%p737) target = $region56
        $region55: #{tpu_custom_call.1} parent=31 // pred_region
          %s740 = smul.u32 2, %s26
          %s742 = ssub.s32 1536, 1536
          %743 = vsyncadd %s733, %s742
          %s744 = smul.addr %s740, 6
          %s745 = smul.addr %s27, 12
          %s746 = sadd.s32 %s744, %s745
          %s747 = smul.addr %s746, 128
          %s748 = scalar_lea.hbm %s3, %s747
          %s749 = sshll.u32 %s736, 4
          %s750 = int_to_ptr.vmem [resolvable:$true] %s749
          %755 = dma.vmem_to_hbm [thread:$0]  %s750, 1536, %s748, %s733, 768, 768, 48
        $region56: #{tpu_custom_call.1} parent=31 // pred_fallthru
          _
      $region32: #{tpu_custom_call.1} parent=5 // pred_fallthru
        _
      %p756 = scmp.le.s32.totalorder 2, %s16
      // Predicated region
      $region57: #{tpu_custom_call.1} parent=5 // pred_check
        %p757 = pneg %p756
      $region58: #{tpu_custom_call.1} parent=5 // pred_check_branch
        %759 = sbr.rel (%p757) target = $region60
      $region59: #{tpu_custom_call.1} parent=5 // pred_region
        %s760 = ssub.s32 %s16, 2
        // Predicated region
        $region61: #{tpu_custom_call.1} parent=59 // pred_check
          %p761 = pneg %p143
        $region62: #{tpu_custom_call.1} parent=59 // pred_check_branch
          %763 = sbr.rel (%p761) target = $region64
        $region63: #{tpu_custom_call.1} parent=59 // pred_region
          %s764 = sand.u32 %s128, 1
          %s765 = scalar_lea.sflag [#allocation5], %s764
          %s766 = sand.u32 %s128, 1
          %s767 = smul.addr %s766, 96
          %s768 = scalar_lea.vmem [#allocation9], %s767
          %769 = dma.done %s765, 1536
        $region64: #{tpu_custom_call.1} parent=59 // pred_fallthru
          _
      $region60: #{tpu_custom_call.1} parent=5 // pred_fallthru
        _
    $region6: #{tpu_custom_call.1} parent=1 // loop_footer
      %s20 = sadd.s32 1, %s16
    $region7: #{tpu_custom_call.1} parent=1 // loop_footer_branch
      %15 = sbr.rel target = $region3
    $region8: #{tpu_custom_call.1} parent=1 // loop_exit
      _
    %770 = vsyncpa [#allocation4], 1
    %s771 = scalar_lea.sflag [#allocation4], 1
    %772 = vsyncpa %s771, 1
    %773 = vsyncpa [#allocation7], 1
    %774 = vsyncpa [#allocation5], 1
    %s775 = scalar_lea.sflag [#allocation5], 1
    %776 = vsyncpa %s775, 1

</llo_original>
